<compile_context>
chip_gen: v6e
topology: v6e:2x2x1
jax: 0.10.0
libtpu: 0.0.40
codegen_flags: <defaults>
</compile_context>

<pallas_src>
import jax
import jax.numpy as jnp
from jax import lax
from jax.experimental import pallas as pl
from jax.experimental.pallas import tpu as pltpu

MARGIN = 0.3
_EPS = 1e-12
# Resident-candidate path is used when the estimated stage-2 VMEM footprint
# (double-buffered, conservatively) stays under this budget -- safe on
# v5e/v6e/v7x once vmem_limit_bytes is raised to 32 MiB.
_RESIDENT_VMEM_BUDGET = 20 * 1024 * 1024
_VMEM_LIMIT = 32 * 1024 * 1024


def _round_up(x, m):
    return ((x + m - 1) // m) * m


# ---------------------------------------------------------------------------
# Stage 1: row-wise L2 normalization (F.normalize(p=2, dim=1, eps=1e-12))
#          + per-row squared norm of the *normalized* rows (reused in stage 2)
# ---------------------------------------------------------------------------
def normalize_kernel(x_ref, xn_ref, n2_ref):
    x = x_ref[...]                                            # (TM, Dp)
    sumsq = jnp.sum(x * x, axis=1, keepdims=True)             # (TM, 1)
    # x / max(||x||, eps)  ==  x * rsqrt(max(||x||^2, eps^2))   (EUP rsqrt)
    xn = x * lax.rsqrt(jnp.maximum(sumsq, _EPS * _EPS))
    xn_ref[...] = xn
    # Squared norms of the normalized rows (hoisted out of the mining loop).
    n2_ref[...] = jnp.sum(xn * xn, axis=1, keepdims=True)


# ---------------------------------------------------------------------------
# Stage 2a (fast path): candidates VMEM-resident, grid over anchor row tiles.
# ---------------------------------------------------------------------------
def mining_resident_kernel(xa_ref, xbt_ref, n2a_ref, n2b_ref,
                           labc_ref, labr_ref, valid_ref, hinge_ref):
    # Canonical (TM,K)x(K,N) MXU matmul -- candidate matrix is pre-transposed.
    gram = jnp.dot(xa_ref[...], xbt_ref[...],
                   preferred_element_type=jnp.float32)        # (TM, Np)
    dist2 = n2a_ref[...] + n2b_ref[...] - 2.0 * gram          # squared dists

    same = labc_ref[...] == labr_ref[...]                     # (TM, Np)
    valid = valid_ref[...] != 0                               # (1, Np) non-pad cols
    is_pos = jnp.logical_and(same, valid)
    is_neg = jnp.logical_and(jnp.logical_not(same), valid)

    ap2 = jnp.max(jnp.where(is_pos, dist2, -jnp.inf), axis=1, keepdims=True)
    an2 = jnp.min(jnp.where(is_neg, dist2, jnp.inf), axis=1, keepdims=True)

    # sqrt/clamp only on the 2*TM selected values (monotone => same selection
    # as clamping/sqrt-ing the full matrix first).
    dist_ap = jnp.sqrt(jnp.clip(ap2, _EPS, None))
    dist_an = jnp.sqrt(jnp.clip(an2, _EPS, None))
    hinge_ref[...] = jnp.maximum(dist_ap - dist_an + MARGIN, 0.0)


# ---------------------------------------------------------------------------
# Stage 2b (fallback): column-tiled candidates + running max/min accumulators.
# ---------------------------------------------------------------------------
def mining_tiled_kernel(xa_ref, xbt_ref, n2a_ref, n2b_ref,
                        labc_ref, labr_ref, valid_ref,
                        hinge_ref, ap2_acc, an2_acc):
    c = pl.program_id(1)

    @pl.when(c == 0)
    def _():
        ap2_acc[...] = jnp.full_like(ap2_acc, -jnp.inf)
        an2_acc[...] = jnp.full_like(an2_acc, jnp.inf)

    gram = jnp.dot(xa_ref[...], xbt_ref[...],
                   preferred_element_type=jnp.float32)        # (TM, TN)
    dist2 = n2a_ref[...] + n2b_ref[...] - 2.0 * gram

    same = labc_ref[...] == labr_ref[...]
    valid = valid_ref[...] != 0
    is_pos = jnp.logical_and(same, valid)
    is_neg = jnp.logical_and(jnp.logical_not(same), valid)

    ap2 = jnp.max(jnp.where(is_pos, dist2, -jnp.inf), axis=1, keepdims=True)
    an2 = jnp.min(jnp.where(is_neg, dist2, jnp.inf), axis=1, keepdims=True)
    ap2_acc[...] = jnp.maximum(ap2_acc[...], ap2)
    an2_acc[...] = jnp.minimum(an2_acc[...], an2)

    @pl.when(c == pl.num_programs(1) - 1)
    def _():
        dist_ap = jnp.sqrt(jnp.clip(ap2_acc[...], _EPS, None))
        dist_an = jnp.sqrt(jnp.clip(an2_acc[...], _EPS, None))
        hinge_ref[...] = jnp.maximum(dist_ap - dist_an + MARGIN, 0.0)


# ---------------------------------------------------------------------------
# Wrapper
# ---------------------------------------------------------------------------
def triplet_loss(global_feat, labels, *, force_tiled=False):
    """global_feat: [N, D] float, labels: [N] int  ->  scalar triplet loss."""
    N, D = global_feat.shape
    Dp = max(_round_up(D, 128), 128)

    # Anchor (row) tile: keep at least 2 row tiles for small batches so both
    # v7x TensorCores get work; 256 for larger batches amortizes per-step
    # overhead (no-op on 1-TC v5e/v6e).
    tm = 64 if N <= 128 else 256
    Np = max(_round_up(N, max(tm, 128)), 128)

    x = jnp.pad(global_feat.astype(jnp.float32), ((0, Np - N), (0, Dp - D)))
    # NOTE: valid_row masks the zero-padded rows (which carry label 0) out of
    # positive/negative mining -- it is load-bearing.
    lab = jnp.pad(labels.astype(jnp.int32), (0, Np - N))
    lab_col = lab.reshape(Np, 1)
    lab_row = lab.reshape(1, Np)
    valid_row = (jnp.arange(Np, dtype=jnp.int32) < N).astype(jnp.int32).reshape(1, Np)

    R = Np // tm

    # Stage 1: row-tiled, pipelined L2 normalize (+ squared row norms).
    xn, n2 = pl.pallas_call(
        normalize_kernel,
        out_shape=(jax.ShapeDtypeStruct((Np, Dp), jnp.float32),
                   jax.ShapeDtypeStruct((Np, 1), jnp.float32)),
        grid=(R,),
        in_specs=[pl.BlockSpec((tm, Dp), lambda i: (i, 0))],
        out_specs=(pl.BlockSpec((tm, Dp), lambda i: (i, 0)),
                   pl.BlockSpec((tm, 1), lambda i: (i, 0))),
        compiler_params=pltpu.CompilerParams(
            dimension_semantics=("parallel",),
            vmem_limit_bytes=_VMEM_LIMIT),
    )(x)

    # One XLA transpose so the gram inside the kernel is a canonical
    # (TM, K) x (K, N) matmul (no per-step XLU transpose of the candidates).
    xnT = jnp.transpose(xn)          # (Dp, Np)
    n2_row = jnp.transpose(n2)       # (1, Np)

    # Conservative stage-2 VMEM estimate for the resident-candidate path
    # (candidate block counted double-buffered + anchor double-buffer + temps).
    est_bytes = (2 * Np * Dp * 4) + (2 * tm * Dp * 4) + (4 * tm * Np * 4)
    resident = (not force_tiled) and est_bytes <= _RESIDENT_VMEM_BUDGET

    if resident:
        # Stage 2a: single "parallel" grid axis over anchor row tiles; the
        # transposed candidate matrix has a constant index_map -> DMA'd once
        # and kept VMEM-resident for all row tiles.
        hinge = pl.pallas_call(
            mining_resident_kernel,
            out_shape=jax.ShapeDtypeStruct((Np, 1), jnp.float32),
            grid=(R,),
            in_specs=[
                pl.BlockSpec((tm, Dp), lambda r: (r, 0)),   # anchors (normalized)
                pl.BlockSpec((Dp, Np), lambda r: (0, 0)),   # candidates^T, resident
                pl.BlockSpec((tm, 1), lambda r: (r, 0)),    # ||anchor||^2
                pl.BlockSpec((1, Np), lambda r: (0, 0)),    # ||candidate||^2
                pl.BlockSpec((tm, 1), lambda r: (r, 0)),    # labels, column form
                pl.BlockSpec((1, Np), lambda r: (0, 0)),    # labels, row form
                pl.BlockSpec((1, Np), lambda r: (0, 0)),    # column validity mask
            ],
            out_specs=pl.BlockSpec((tm, 1), lambda r: (r, 0)),
            compiler_params=pltpu.CompilerParams(
                dimension_semantics=("parallel",),
                vmem_limit_bytes=_VMEM_LIMIT),
        )(xn, xnT, n2, n2_row, lab_col, lab_row, valid_row)
    else:
        # Stage 2b: (row tiles) x (column tiles), running max/min accumulators.
        tn = min(256, Np)
        C = Np // tn
        hinge = pl.pallas_call(
            mining_tiled_kernel,
            out_shape=jax.ShapeDtypeStruct((Np, 1), jnp.float32),
            grid=(R, C),
            in_specs=[
                pl.BlockSpec((tm, Dp), lambda r, c: (r, 0)),   # anchors
                pl.BlockSpec((Dp, tn), lambda r, c: (0, c)),   # candidates^T tile
                pl.BlockSpec((tm, 1), lambda r, c: (r, 0)),    # ||anchor||^2
                pl.BlockSpec((1, tn), lambda r, c: (0, c)),    # ||candidate||^2
                pl.BlockSpec((tm, 1), lambda r, c: (r, 0)),    # labels, column form
                pl.BlockSpec((1, tn), lambda r, c: (0, c)),    # labels, row form
                pl.BlockSpec((1, tn), lambda r, c: (0, c)),    # column validity mask
            ],
            out_specs=pl.BlockSpec((tm, 1), lambda r, c: (r, 0)),
            scratch_shapes=[pltpu.VMEM((tm, 1), jnp.float32),  # running max pos dist^2
                            pltpu.VMEM((tm, 1), jnp.float32)], # running min neg dist^2
            compiler_params=pltpu.CompilerParams(
                dimension_semantics=("parallel", "arbitrary"),
                vmem_limit_bytes=_VMEM_LIMIT),
        )(xn, xnT, n2, n2_row, lab_col, lab_row, valid_row)

    # MarginRankingLoss(margin, y=1) with mean reduction; padded anchor rows
    # are simply not read.  (1.0 / N) is a compile-time constant.
    return jnp.sum(hinge[:N, 0]) * (1.0 / N)


# ---------------------------------------------------------------------------
# Pure-JAX reference mirroring the PyTorch module
# ---------------------------------------------------------------------------
def triplet_loss_ref(feat, labels, margin=MARGIN):
    x = feat / jnp.maximum(jnp.linalg.norm(feat, axis=1, keepdims=True), 1e-12)
    xx = jnp.sum(x * x, axis=1, keepdims=True)
    d2 = xx + xx.T - 2.0 * (x @ x.T)
    d = jnp.sqrt(jnp.clip(d2, 1e-12, None))
    is_pos = labels[:, None] == labels[None, :]
    ap = jnp.max(jnp.where(is_pos, d, -jnp.inf), axis=1)
    an = jnp.min(jnp.where(is_pos, jnp.inf, d), axis=1)
    return jnp.mean(jnp.maximum(ap - an + margin, 0.0))


if __name__ == "__main__":
    key = jax.random.PRNGKey(0)
    N, D = 8, 32                       # batch of 8 embeddings, hidden=32
    feat = jax.random.normal(key, (N, D), dtype=jnp.float32)
    labels = jnp.array([0, 0, 1, 1, 2, 2, 3, 3], dtype=jnp.int32)  # 2 per class

    ref = triplet_loss_ref(feat, labels)

    # Fast path (resident candidates).
    loss = jax.block_until_ready(triplet_loss(feat, labels))
    assert jnp.allclose(loss, ref, atol=1e-5, rtol=1e-5), (loss, ref)

    # Tiled fallback path (exercised explicitly so it stays correct).
    loss_t = jax.block_until_ready(triplet_loss(feat, labels, force_tiled=True))
    assert jnp.allclose(loss_t, ref, atol=1e-5, rtol=1e-5), (loss_t, ref)

    print("KERNEL_OK")
</pallas_src>

<mosaic_0001>
module attributes {stable_mosaic.version = 11 : i64} {
  func.func @normalize_kernel(%arg0: i32, %arg1: memref<64x128xf32, #tpu.memory_space<vmem>>, %arg2: memref<64x128xf32, #tpu.memory_space<vmem>>, %arg3: memref<64x1xf32, #tpu.memory_space<vmem>>) attributes {dimension_semantics = [#tpu.dimension_semantics<parallel>], iteration_bounds = array<i64: 2>, scalar_prefetch = 0 : i64, scratch_operands = 0 : i64, tpu.core_type = #tpu.core_type<tc>, window_params = [{transform_indices = @transform_0, window_bounds = array<i64: 64, 128>}, {transform_indices = @transform_1, window_bounds = array<i64: 64, 128>}, {transform_indices = @transform_2, window_bounds = array<i64: 64, 1>}]} {
    %c0 = arith.constant 0 : index
    %c0_0 = arith.constant 0 : index
    %0 = vector.load %arg1[%c0, %c0_0] : memref<64x128xf32, #tpu.memory_space<vmem>>, vector<64x128xf32>
    %1 = arith.mulf %0, %0 : vector<64x128xf32>
    %cst = arith.constant dense<0.000000e+00> : vector<64xf32>
    %2 = vector.multi_reduction <add>, %1, %cst [1] : vector<64x128xf32> to vector<64xf32>
    %3 = vector.shape_cast %2 : vector<64xf32> to vector<64x1xf32>
    %cst_1 = arith.constant 1.000000e-24 : f32
    %4 = vector.broadcast %cst_1 : f32 to vector<64x1xf32>
    %5 = arith.maximumf %3, %4 : vector<64x1xf32>
    %6 = math.rsqrt %5 : vector<64x1xf32>
    %7 = vector.broadcast %6 : vector<64x1xf32> to vector<64x128xf32>
    %8 = arith.mulf %0, %7 : vector<64x128xf32>
    %c0_2 = arith.constant 0 : index
    %c0_3 = arith.constant 0 : index
    %9 = vector.load %arg2[%c0_2, %c0_3] : memref<64x128xf32, #tpu.memory_space<vmem>>, vector<64x128xf32>
    tpu.vector_store %arg2[%c0_2, %c0_3], %8 {strides = array<i32>} : memref<64x128xf32, #tpu.memory_space<vmem>>, vector<64x128xf32>,
    %10 = arith.mulf %8, %8 : vector<64x128xf32>
    %cst_4 = arith.constant dense<0.000000e+00> : vector<64xf32>
    %11 = vector.multi_reduction <add>, %10, %cst_4 [1] : vector<64x128xf32> to vector<64xf32>
    %12 = vector.shape_cast %11 : vector<64xf32> to vector<64x1xf32>
    %c0_5 = arith.constant 0 : index
    %c0_6 = arith.constant 0 : index
    %13 = vector.load %arg3[%c0_5, %c0_6] : memref<64x1xf32, #tpu.memory_space<vmem>>, vector<64x1xf32>
    tpu.vector_store %arg3[%c0_5, %c0_6], %12 {strides = array<i32>} : memref<64x1xf32, #tpu.memory_space<vmem>>, vector<64x1xf32>,
    return
  }
  func.func @transform_0(%arg0: i32) -> (i32, i32) {
    %c0_i32 = arith.constant 0 : i32
    %c0_i32_0 = arith.constant 0 : i32
    return %arg0, %c0_i32 : i32, i32
  }
  func.func @transform_1(%arg0: i32) -> (i32, i32) {
    %c0_i32 = arith.constant 0 : i32
    %c0_i32_0 = arith.constant 0 : i32
    return %arg0, %c0_i32 : i32, i32
  }
  func.func @transform_2(%arg0: i32) -> (i32, i32) {
    %c0_i32 = arith.constant 0 : i32
    %c0_i32_0 = arith.constant 0 : i32
    return %arg0, %c0_i32 : i32, i32
  }
}

</mosaic_0001>

<llo_original>
// kernel: tpu_custom_call.1
$region0: #{tpu_custom_call.1}
  #allocation0 [shape = 'u32[]', space=smem, size = 0x4, offset = 0x4, fixed_abs, tag = 'smem constant byte address 0x4 - core index']
  #allocation1 [shape = 'u32[144,128]{1,0:T(1,128)}', space=vmem, size = 0x12000, scoped, tag = 'internal scratch']
  %s0 = inlined_call_operand.hbm [shape: f32[128,128], index: 0, kind: input, shape index: {}]
  %s1 = inlined_call_operand.hbm [shape: f32[128,128], index: 1, kind: output, shape index: {0}]
  %s2 = inlined_call_operand.vmem [shape: f32[128,1], index: 2, kind: output, shape index: {1}]
  %3 = xla_tuple %s1, %s2
  %s4 = sld [smem:[#allocation0]]
  $region49: #{tpu_custom_call.1} parent=0
    _
  %s6 = ssub.s32 1, %s4
  %s7 = scalar_select 0, %s6, %s4
  $region1: #{tpu_custom_call.1} parent=0
    #allocation2 [shape = 'u8[65536]{0}', space=vmem, size = 0x10000, scoped, tag = 'input window, operand 0']
    #allocation3 [shape = 's32[2]{0}', space=sflag, size = 0x8, scoped, tag = 'scoped memory for tpu_custom_call.1']
    #allocation4 [shape = 's32[2]{0}', space=sflag, size = 0x8, scoped, tag = 'scoped memory for tpu_custom_call.1']
    #allocation5 [shape = 'u8[65536]{0}', space=vmem, size = 0x10000, scoped, tag = 'output window, operand 0']
    %8 = vsyncpa [#allocation3], 0
    %s9 = scalar_lea.sflag [#allocation3], 1
    %10 = vsyncpa %s9, 0
    %11 = vsyncpa [#allocation4], 0
    %s12 = scalar_lea.sflag [#allocation4], 1
    %13 = vsyncpa %s12, 0
    loop: start=0, step=1, limit=4
    $region2: #{tpu_custom_call.1} parent=1 // loop_pre_header
      _
    $region3: #{tpu_custom_call.1} parent=1 // loop_header
      %s15 = sphi 0, %s19
      %p16 = scmp.ge.s32.totalorder %s15, 4
      %s25 = sphi 0, %s27
      %s28 = sphi 0, %s25
      %s29 = sphi 0, %s28
      %s45 = sphi 0, %s29
      %s51 = sphi 0, %s53
      %s54 = sphi 0, %s51
      %s55 = sphi 0, %s54
      %s71 = sphi 0, %s55
      %s77 = sphi 0, %s79
      %s80 = sphi 0, %s77
      %s81 = sphi 0, %s80
      %s97 = sphi 0, %s81
    $region4: #{tpu_custom_call.1} parent=1 // loop_header_branch
      %18 = sbr.rel (%p16) target = $region8
    $region5: #{tpu_custom_call.1} parent=1 // loop_body
      %s20 = ssub.s32 %s15, 1
      %s21 = ssub.s32 %s15, 2
      %s22 = sadd.s32 %s15, 1
      %s23 = ssub.s32 %s15, %s22
      %p24 = scmp.eq.s32.totalorder %s23, 0
      %s26 = sadd.s32 %s25, 1
      %s27 = scalar_select %p24, %s25, %s26
      %p30 = pneg %p24
      %p31 = scmp.eq.s32.totalorder %s15, 1
      %p32 = por %p30, %p31
      %p33 = scmp.ne.s32.totalorder %s25, %s28
      %p34 = scmp.eq.s32.totalorder %s15, 0
      %p35 = por %p33, %p34
      %p36 = scmp.ne.s32.totalorder %s25, %s28
      %p37 = scmp.eq.s32.totalorder %s20, 1
      %p38 = por %p36, %p37
      %p39 = scmp.ne.s32.totalorder %s28, %s29
      %p40 = scmp.eq.s32.totalorder %s20, 0
      %p41 = por %p39, %p40
      %p42 = scmp.ne.s32.totalorder %s28, %s29
      %p43 = scmp.eq.s32.totalorder %s21, 1
      %p44 = por %p42, %p43
      %p46 = scmp.ne.s32.totalorder %s29, %s45
      %p47 = scmp.eq.s32.totalorder %s21, 0
      %p48 = por %p46, %p47
      %s49 = ssub.s32 %s15, %s22
      %p50 = scmp.eq.s32.totalorder %s49, 0
      %s52 = sadd.s32 %s51, 1
      %s53 = scalar_select %p50, %s51, %s52
      %p56 = pneg %p50
      %p57 = scmp.eq.s32.totalorder %s15, 1
      %p58 = por %p56, %p57
      %p59 = scmp.ne.s32.totalorder %s51, %s54
      %p60 = scmp.eq.s32.totalorder %s15, 0
      %p61 = por %p59, %p60
      %p62 = scmp.ne.s32.totalorder %s51, %s54
      %p63 = scmp.eq.s32.totalorder %s20, 1
      %p64 = por %p62, %p63
      %p65 = scmp.ne.s32.totalorder %s54, %s55
      %p66 = scmp.eq.s32.totalorder %s20, 0
      %p67 = por %p65, %p66
      %p68 = scmp.ne.s32.totalorder %s54, %s55
      %p69 = scmp.eq.s32.totalorder %s21, 1
      %p70 = por %p68, %p69
      %p72 = scmp.ne.s32.totalorder %s55, %s71
      %p73 = scmp.eq.s32.totalorder %s21, 0
      %p74 = por %p72, %p73
      %s75 = ssub.s32 %s15, %s22
      %p76 = scmp.eq.s32.totalorder %s75, 0
      %s78 = sadd.s32 %s77, 1
      %s79 = scalar_select %p76, %s77, %s78
      %p82 = pneg %p76
      %p83 = scmp.eq.s32.totalorder %s15, 1
      %p84 = por %p82, %p83
      %p85 = scmp.ne.s32.totalorder %s77, %s80
      %p86 = scmp.eq.s32.totalorder %s15, 0
      %p87 = por %p85, %p86
      %p88 = scmp.ne.s32.totalorder %s77, %s80
      %p89 = scmp.eq.s32.totalorder %s20, 1
      %p90 = por %p88, %p89
      %p91 = scmp.ne.s32.totalorder %s80, %s81
      %p92 = scmp.eq.s32.totalorder %s20, 0
      %p93 = por %p91, %p92
      %p94 = scmp.ne.s32.totalorder %s80, %s81
      %p95 = scmp.eq.s32.totalorder %s21, 1
      %p96 = por %p94, %p95
      %p98 = scmp.ne.s32.totalorder %s81, %s97
      %p99 = scmp.eq.s32.totalorder %s21, 0
      %p100 = por %p98, %p99
      %p101 = scmp.le.s32.totalorder 1, %s15
      %p102 = scmp.lt.s32.totalorder %s15, 3
      %p103 = pnand %p101, %p102
      %p104 = pneg %p103
      // Predicated region
      $region9: #{tpu_custom_call.1} parent=5 // pred_check
        _
      $region10: #{tpu_custom_call.1} parent=5 // pred_check_branch
        %106 = sbr.rel (%p103) target = $region12
      $region11: #{tpu_custom_call.1} parent=5 // pred_region
        %s107 = ssub.s32 %s15, 1
      $region12: #{tpu_custom_call.1} parent=5 // pred_fallthru
        _
      %p108 = scmp.lt.s32.totalorder %s15, 2
      // Predicated region
      $region13: #{tpu_custom_call.1} parent=5 // pred_check
        %p109 = pneg %p108
      $region14: #{tpu_custom_call.1} parent=5 // pred_check_branch
        %111 = sbr.rel (%p109) target = $region16
      $region15: #{tpu_custom_call.1} parent=5 // pred_region
        // Predicated region
        $region17: #{tpu_custom_call.1} parent=15 // pred_check
          %p112 = pneg %p35
        $region18: #{tpu_custom_call.1} parent=15 // pred_check_branch
          %114 = sbr.rel (%p112) target = $region20
        $region19: #{tpu_custom_call.1} parent=15 // pred_region
          %s115 = sand.u32 %s25, 1
          %s116 = scalar_lea.sflag [#allocation3], %s115
          %s117 = sand.u32 %s25, 1
          %s118 = smul.addr %s117, 64
          %s119 = scalar_lea.vmem [#allocation2], %s118
          %s120 = smul.u32 8, %s15
          %s122 = ssub.s32 1024, 1024
          %123 = vsyncadd %s116, %s122
          %s124 = smul.addr %s120, 128
          %s125 = scalar_lea.hbm %s0, %s124
          %s126 = sshll.u32 %s119, 4
          %s127 = int_to_ptr.vmem [resolvable:$true] %s126
          %132 = dma.hbm_to_vmem [thread:$0]  %s125, 1024, %s127, %s116, 128, 128, 8
        $region20: #{tpu_custom_call.1} parent=15 // pred_fallthru
          _
      $region16: #{tpu_custom_call.1} parent=5 // pred_fallthru
        _
      %p133 = scmp.le.s32.totalorder 1, %s15
      %p134 = scmp.lt.s32.totalorder %s15, 3
      %p135 = pnand %p133, %p134
      %p136 = pneg %p135
      // Predicated region
      $region21: #{tpu_custom_call.1} parent=5 // pred_check
        _
      $region22: #{tpu_custom_call.1} parent=5 // pred_check_branch
        %138 = sbr.rel (%p135) target = $region24
      $region23: #{tpu_custom_call.1} parent=5 // pred_region
        %s139 = ssub.s32 %s15, 1
        %s140 = sand.u32 %s28, 1
        %s141 = scalar_lea.sflag [#allocation3], %s140
        %s142 = sand.u32 %s28, 1
        %s143 = smul.addr %s142, 64
        %s144 = scalar_lea.vmem [#allocation2], %s143
        // Predicated region
        $region25: #{tpu_custom_call.1} parent=23 // pred_check
          %p145 = pneg %p41
        $region26: #{tpu_custom_call.1} parent=23 // pred_check_branch
          %147 = sbr.rel (%p145) target = $region28
        $region27: #{tpu_custom_call.1} parent=23 // pred_region
          %148 = dma.done %s141, 1024
        $region28: #{tpu_custom_call.1} parent=23 // pred_fallthru
          _
        %s149 = sand.u32 %s28, 1
        %s150 = scalar_lea.sflag [#allocation3], %s149
        %s151 = sand.u32 %s28, 1
        %s152 = smul.addr %s151, 64
        %s153 = scalar_lea.vmem [#allocation2], %s152
        %p154 = pneg %p41
        %p155 = pneg %p38
        %p156 = pneg %p67
        %p157 = pneg %p64
        %s158 = sand.u32 %s54, 1
        %s159 = scalar_lea.sflag [#allocation4], %s158
        %s160 = sand.u32 %s54, 1
        %s161 = smul.addr %s160, 64
        %s162 = scalar_lea.vmem [#allocation5], %s161
        %p163 = pneg %p93
        %p164 = pneg %p90
        %s165 = smul.u32 8, %s20
        %p166 = scmp.lt.s32.totalorder %s165, 15
        %s167 = scalar_select %p166, %s165, 15
        %s168 = smul.addr %s167, 8
        %s169 = scalar_lea.vmem %s2, %s168
        %s170 = smul.u32 8, %s20
        %s171 = smul.u32 8, %s20
        %s172 = smul.u32 8, %s20
        %p173 = scmp.lt.s32.totalorder %s172, 15
        %s174 = scalar_select %p173, %s172, 15
        %s175 = smul.addr %s174, 8
        %s176 = scalar_lea.vmem %s2, %s175
        %s177 = smul.u32 8, %s20
        %v178 = vld [vmem:[%s144] sm:$0xff]
        %v179 = vld [vmem:[%s144 + $0x8] sm:$0xff]
        %v180 = vld [vmem:[%s144 + $0x10] sm:$0xff]
        %v181 = vld [vmem:[%s144 + $0x18] sm:$0xff]
        %v182 = vld [vmem:[%s144 + $0x20] sm:$0xff]
        %v183 = vld [vmem:[%s144 + $0x28] sm:$0xff]
        %v184 = vld [vmem:[%s144 + $0x30] sm:$0xff]
        %v185 = vld [vmem:[%s144 + $0x38] sm:$0xff]
        %v186 = vmul.f32 %v178, %v178
        %v187 = vmul.f32 %v179, %v179
        %v188 = vmul.f32 %v180, %v180
        %v189 = vmul.f32 %v181, %v181
        %v190 = vmul.f32 %v182, %v182
        %v191 = vmul.f32 %v183, %v183
        %v192 = vmul.f32 %v184, %v184
        %v193 = vmul.f32 %v185, %v185
        %194 = vadd.xlane.f32.xlu0 %v186
        %v195 = vpop.xlane.xlu0 %194
        %196 = vadd.xlane.f32.xlu0 %v187
        %v197 = vpop.xlane.xlu0 %196
        %198 = vadd.xlane.f32.xlu0 %v188
        %v199 = vpop.xlane.xlu0 %198
        %200 = vadd.xlane.f32.xlu0 %v189
        %v201 = vpop.xlane.xlu0 %200
        %202 = vadd.xlane.f32.xlu0 %v190
        %v203 = vpop.xlane.xlu0 %202
        %204 = vadd.xlane.f32.xlu0 %v191
        %v205 = vpop.xlane.xlu0 %204
        %206 = vadd.xlane.f32.xlu0 %v192
        %v207 = vpop.xlane.xlu0 %206
        %208 = vadd.xlane.f32.xlu0 %v193
        %v209 = vpop.xlane.xlu0 %208
        %v210 = vmax.f32 %v195, 1e-24
        %v211 = vmax.f32 %v197, 1e-24
        %v212 = vmax.f32 %v199, 1e-24
        %v213 = vmax.f32 %v201, 1e-24
        %v214 = vmax.f32 %v203, 1e-24
        %v215 = vmax.f32 %v205, 1e-24
        %v216 = vmax.f32 %v207, 1e-24
        %v217 = vmax.f32 %v209, 1e-24
        %v218 = vrsqrt.pop %v210
        %v219 = vrsqrt.pop %v211
        %v220 = vrsqrt.pop %v212
        %v221 = vrsqrt.pop %v213
        %v222 = vrsqrt.pop %v214
        %v223 = vrsqrt.pop %v215
        %v224 = vrsqrt.pop %v216
        %v225 = vrsqrt.pop %v217
        %v226 = vmul.f32 %v178, %v218
        %v227 = vmul.f32 %v179, %v219
        %v228 = vmul.f32 %v180, %v220
        %v229 = vmul.f32 %v181, %v221
        %v230 = vmul.f32 %v182, %v222
        %v231 = vmul.f32 %v183, %v223
        %v232 = vmul.f32 %v184, %v224
        %v233 = vmul.f32 %v185, %v225
        %234 = vst [vmem:[%s162] sm:$0xff] %v226
        %235 = vst [vmem:[%s162 + $0x8] sm:$0xff] %v227
        %236 = vst [vmem:[%s162 + $0x10] sm:$0xff] %v228
        %237 = vst [vmem:[%s162 + $0x18] sm:$0xff] %v229
        %238 = vst [vmem:[%s162 + $0x20] sm:$0xff] %v230
        %239 = vst [vmem:[%s162 + $0x28] sm:$0xff] %v231
        %240 = vst [vmem:[%s162 + $0x30] sm:$0xff] %v232
        %241 = vst [vmem:[%s162 + $0x38] sm:$0xff] %v233
        %v242 = vmul.f32 %v226, %v226
        %v243 = vmul.f32 %v227, %v227
        %v244 = vmul.f32 %v228, %v228
        %v245 = vmul.f32 %v229, %v229
        %v246 = vmul.f32 %v230, %v230
        %v247 = vmul.f32 %v231, %v231
        %v248 = vmul.f32 %v232, %v232
        %v249 = vmul.f32 %v233, %v233
        %250 = vadd.xlane.f32.xlu0 %v242
        %v251 = vpop.xlane.xlu0 %250
        %252 = vadd.xlane.f32.xlu0 %v243
        %v253 = vpop.xlane.xlu0 %252
        %254 = vadd.xlane.f32.xlu0 %v244
        %v255 = vpop.xlane.xlu0 %254
        %256 = vadd.xlane.f32.xlu0 %v245
        %v257 = vpop.xlane.xlu0 %256
        %258 = vadd.xlane.f32.xlu0 %v246
        %v259 = vpop.xlane.xlu0 %258
        %260 = vadd.xlane.f32.xlu0 %v247
        %v261 = vpop.xlane.xlu0 %260
        %262 = vadd.xlane.f32.xlu0 %v248
        %v263 = vpop.xlane.xlu0 %262
        %264 = vadd.xlane.f32.xlu0 %v249
        %v265 = vpop.xlane.xlu0 %264
        %vm266 = vcmask 7168
        %267 = vst.msk [vmem:[%s176] sm:$0xff] %vm266, %v251
        %268 = vst.msk [vmem:[%s176 + $0x8] sm:$0xff] %vm266, %v253
        %269 = vst.msk [vmem:[%s176 + $0x10] sm:$0xff] %vm266, %v255
        %270 = vst.msk [vmem:[%s176 + $0x18] sm:$0xff] %vm266, %v257
        %271 = vst.msk [vmem:[%s176 + $0x20] sm:$0xff] %vm266, %v259
        %272 = vst.msk [vmem:[%s176 + $0x28] sm:$0xff] %vm266, %v261
        %273 = vst.msk [vmem:[%s176 + $0x30] sm:$0xff] %vm266, %v263
        %274 = vst.msk [vmem:[%s176 + $0x38] sm:$0xff] %vm266, %v265
        %s275 = sand.u32 %s54, 1
        %s276 = scalar_lea.sflag [#allocation4], %s275
        %s277 = sand.u32 %s54, 1
        %s278 = smul.addr %s277, 64
        %s279 = scalar_lea.vmem [#allocation5], %s278
        %s280 = smul.u32 8, %s20
        %p281 = scmp.lt.s32.totalorder %s280, 15
        %s282 = scalar_select %p281, %s280, 15
        %s283 = smul.addr %s282, 8
        %s284 = scalar_lea.vmem %s2, %s283
        // Predicated region
        $region29: #{tpu_custom_call.1} parent=23 // pred_check
          %p285 = pneg %p64
        $region30: #{tpu_custom_call.1} parent=23 // pred_check_branch
          %287 = sbr.rel (%p285) target = $region32
        $region31: #{tpu_custom_call.1} parent=23 // pred_region
          %s288 = smul.u32 8, %s20
          %s290 = ssub.s32 1024, 1024
          %291 = vsyncadd %s276, %s290
          %s292 = smul.addr %s288, 128
          %s293 = scalar_lea.hbm %s1, %s292
          %s294 = sshll.u32 %s279, 4
          %s295 = int_to_ptr.vmem [resolvable:$true] %s294
          %300 = dma.vmem_to_hbm [thread:$0]  %s295, 1024, %s293, %s276, 128, 128, 8
        $region32: #{tpu_custom_call.1} parent=23 // pred_fallthru
          _
        // Predicated region
        $region33: #{tpu_custom_call.1} parent=23 // pred_check
          %p301 = pneg %p90
        $region34: #{tpu_custom_call.1} parent=23 // pred_check_branch
          %303 = sbr.rel (%p301) target = $region36
        $region35: #{tpu_custom_call.1} parent=23 // pred_region
          %s304 = smul.u32 8, %s20
        $region36: #{tpu_custom_call.1} parent=23 // pred_fallthru
          _
      $region24: #{tpu_custom_call.1} parent=5 // pred_fallthru
        _
      %p305 = scmp.le.s32.totalorder 2, %s15
      // Predicated region
      $region37: #{tpu_custom_call.1} parent=5 // pred_check
        %p306 = pneg %p305
      $region38: #{tpu_custom_call.1} parent=5 // pred_check_branch
        %308 = sbr.rel (%p306) target = $region40
      $region39: #{tpu_custom_call.1} parent=5 // pred_region
        %s309 = ssub.s32 %s15, 2
        // Predicated region
        $region41: #{tpu_custom_call.1} parent=39 // pred_check
          %p310 = pneg %p70
        $region42: #{tpu_custom_call.1} parent=39 // pred_check_branch
          %312 = sbr.rel (%p310) target = $region44
        $region43: #{tpu_custom_call.1} parent=39 // pred_region
          %s313 = sand.u32 %s55, 1
          %s314 = scalar_lea.sflag [#allocation4], %s313
          %s315 = sand.u32 %s55, 1
          %s316 = smul.addr %s315, 64
          %s317 = scalar_lea.vmem [#allocation5], %s316
          %318 = dma.done %s314, 1024
        $region44: #{tpu_custom_call.1} parent=39 // pred_fallthru
          _
        // Predicated region
        $region45: #{tpu_custom_call.1} parent=39 // pred_check
          %p319 = pneg %p96
        $region46: #{tpu_custom_call.1} parent=39 // pred_check_branch
          %321 = sbr.rel (%p319) target = $region48
        $region47: #{tpu_custom_call.1} parent=39 // pred_region
          %s322 = smul.u32 8, %s21
          %p323 = scmp.lt.s32.totalorder %s322, 15
          %s324 = scalar_select %p323, %s322, 15
          %s325 = smul.addr %s324, 8
          %s326 = scalar_lea.vmem %s2, %s325
        $region48: #{tpu_custom_call.1} parent=39 // pred_fallthru
          _
      $region40: #{tpu_custom_call.1} parent=5 // pred_fallthru
        _
    $region6: #{tpu_custom_call.1} parent=1 // loop_footer
      %s19 = sadd.s32 1, %s15
    $region7: #{tpu_custom_call.1} parent=1 // loop_footer_branch
      %14 = sbr.rel target = $region3
    $region8: #{tpu_custom_call.1} parent=1 // loop_exit
      _
    %327 = vsyncpa [#allocation3], 1
    %s328 = scalar_lea.sflag [#allocation3], 1
    %329 = vsyncpa %s328, 1
    %330 = vsyncpa [#allocation4], 1
    %s331 = scalar_lea.sflag [#allocation4], 1
    %332 = vsyncpa %s331, 1

</llo_original>
